<compile_context>
chip_gen: v7x
topology: tpu7x:2x2x1
jax: 0.10.0
libtpu: 0.0.40
codegen_flags: <defaults>
</compile_context>

<pallas_src>
import functools
import math

import jax
import jax.numpy as jnp
from jax import lax
from jax.experimental import pallas as pl
from jax.experimental.pallas import tpu as pltpu

GAMMA_NEG = 2.0
GAMMA_POS = 1.0
CLIP = 0.05
EPS = 1e-8

_LANE = 128
_SUBLANE = 8
# Row granularity safe for every input dtype's native sublane packing
# (f32: 8, bf16: 16, int8/bool: 32 rows per packed tile).
_ROW_GRAN = 32


def _static_pow(base, gamma):
    """base ** gamma with gamma known at trace time.

    Small non-negative integer gammas (incl. the defaults 1 and 2) become VPU
    multiplies; anything else falls back to jnp.power (EUP exp/log).
    gamma == 0 returns ones (matches torch.pow(x, 0) == 1, incl. 0**0)."""
    g = float(gamma)
    if g == 0.0:
        return jnp.ones_like(base)
    if g.is_integer() and 0 < g <= 8:
        n = int(g)
        result = None
        cur = base
        while n:
            if n & 1:
                result = cur if result is None else result * cur
            n >>= 1
            if n:
                cur = cur * cur
        return result
    return jnp.power(base, g)


def _asl_kernel(x_ref, y_ref, part_ref, *, gamma_neg, gamma_pos, clip, eps,
                tile_rows, valid_elems, needs_mask):
    i = pl.program_id(0)

    x = x_ref[...].astype(jnp.float32)
    y = y_ref[...].astype(jnp.float32)

    xs_pos = jax.nn.sigmoid(x)
    xs_neg = 1.0 - xs_pos
    if clip is not None and clip > 0:
        # Matches torch's (xs_neg + clip).clamp(max=1). Note: pt below uses the
        # *clipped* xs_neg, same as the PyTorch module -- do not "fix" this.
        xs_neg = jnp.minimum(xs_neg + clip, 1.0)

    # Contract: y is a binarized (0/1) multi-label target (as documented in the
    # PyTorch module). Then
    #   y*log(max(xs_pos,eps)) + (1-y)*log(max(xs_neg,eps)) == log(max(pt,eps))
    # with pt = y*xs_pos + (1-y)*xs_neg  -> a single EUP log per element.
    pt = xs_pos * y + xs_neg * (1.0 - y)
    loss = jnp.log(jnp.maximum(pt, eps))

    if gamma_neg > 0 or gamma_pos > 0:
        # disable_torch_grad_focal_loss only affects autodiff; forward identical.
        omp = 1.0 - pt
        gp, gn = float(gamma_pos), float(gamma_neg)
        if gp == 0.0:
            w = jnp.where(y > 0, 1.0, _static_pow(omp, gn))
        elif gn == 0.0:
            w = jnp.where(y > 0, _static_pow(omp, gp), 1.0)
        elif gn >= gp:
            # omp**gp * (1 or omp**(gn-gp)): fewer VPU ops than materializing
            # both full-power branches and selecting (default: omp*where(y>0,1,omp)).
            w = _static_pow(omp, gp) * jnp.where(y > 0, 1.0,
                                                 _static_pow(omp, gn - gp))
        else:
            w = _static_pow(omp, gn) * jnp.where(y > 0,
                                                 _static_pow(omp, gp - gn), 1.0)
        loss = loss * w

    def emit(apply_mask):
        l = loss
        if apply_mask:
            # Mask wrapper padding and out-of-bounds tail rows (last block only).
            grow = lax.broadcasted_iota(jnp.int32, l.shape, 0) + i * tile_rows
            full_rows = valid_elems // _LANE
            rem = valid_elems % _LANE
            m = grow < full_rows
            if rem:
                lane = lax.broadcasted_iota(jnp.int32, l.shape, 1)
                m = m | ((grow == full_rows) & (lane < rem))
            l = jnp.where(m, l, 0.0)
        # Fold the tile into one (8, 128) vreg with pure vreg-vreg VPU adds:
        # the reshape splits exactly on (8, 128) vreg-tile boundaries, so no
        # XLU work happens in the hot loop. The cross-lane reduce over the
        # tiny partials happens once, in the wrapper.
        part_ref[...] = l.reshape(tile_rows // _SUBLANE, _SUBLANE, _LANE).sum(axis=0)

    if needs_mask:
        last = pl.num_programs(0) - 1

        @pl.when(i == last)
        def _():
            emit(True)

        @pl.when(i != last)
        def _():
            emit(False)
    else:
        emit(False)


def asymmetric_loss(x, y, *, gamma_neg=GAMMA_NEG, gamma_pos=GAMMA_POS,
                    clip=CLIP, eps=EPS, tile_rows=None):
    """ASL forward: -sum(loss). y must be a binarized (0/1) target (module contract).

    x may be f32/bf16; y may be f32/bf16/int8 (int8/bool halves HBM bytes for y)."""
    assert x.shape == y.shape, (x.shape, y.shape)
    n_elems = math.prod(x.shape)
    assert n_elems > 0

    # Lane-dense flat view (rows, 128). Free reshape when numel % 128 == 0;
    # otherwise pad (<=127 neutral elements, a copy) and mask the pad in-kernel.
    x_flat = x.reshape(-1)
    y_flat = y.reshape(-1)
    if n_elems % _LANE:
        pad = _LANE - n_elems % _LANE
        x_flat = jnp.pad(x_flat, (0, pad))
        y_flat = jnp.pad(y_flat, (0, pad))
    rows = x_flat.shape[0] // _LANE
    x2 = x_flat.reshape(rows, _LANE)
    y2 = y_flat.reshape(rows, _LANE)

    # Tile size: grow toward a VMEM budget. Per element: 2 pipeline buffers per
    # input + ~6 live f32 full-tile temporaries of headroom for Mosaic.
    per_elem_bytes = 2 * (x.dtype.itemsize + y.dtype.itemsize) + 24
    budget_bytes = 28 * 1024 * 1024          # keeps total well under v7x's 64 MiB VMEM
    max_rows = max(_ROW_GRAN,
                   (budget_bytes // (per_elem_bytes * _LANE)) // _ROW_GRAN * _ROW_GRAN)
    if tile_rows is None:
        tile_rows = max_rows
    tile_rows = max(_ROW_GRAN,
                    min(int(tile_rows), max_rows) // _ROW_GRAN * _ROW_GRAN)
    # No point tiling bigger than the (granularity-rounded) input.
    tile_rows = min(tile_rows, pl.cdiv(rows, _ROW_GRAN) * _ROW_GRAN)

    num_blocks = pl.cdiv(rows, tile_rows)
    needs_mask = (num_blocks * tile_rows * _LANE) != n_elems

    kernel = functools.partial(
        _asl_kernel,
        gamma_neg=gamma_neg, gamma_pos=gamma_pos, clip=clip, eps=eps,
        tile_rows=tile_rows, valid_elems=n_elems, needs_mask=needs_mask)

    bytes_accessed = (n_elems * (x.dtype.itemsize + y.dtype.itemsize)
                      + num_blocks * _SUBLANE * _LANE * 4)
    cost = pl.CostEstimate(flops=14 * n_elems, transcendentals=2 * n_elems,
                           bytes_accessed=bytes_accessed)

    partials = pl.pallas_call(
        kernel,
        out_shape=jax.ShapeDtypeStruct((num_blocks * _SUBLANE, _LANE), jnp.float32),
        grid_spec=pltpu.PrefetchScalarGridSpec(
            num_scalar_prefetch=0,
            grid=(num_blocks,),
            in_specs=[
                pl.BlockSpec((tile_rows, _LANE), lambda i: (i, 0)),
                pl.BlockSpec((tile_rows, _LANE), lambda i: (i, 0)),
            ],
            out_specs=pl.BlockSpec((_SUBLANE, _LANE), lambda i: (i, 0)),
        ),
        compiler_params=pltpu.CompilerParams(
            # Independent per-block partials -> "parallel" lets v7x shard the
            # grid across both TensorCores (no-op on single-TC v5e/v6e).
            dimension_semantics=("parallel",),
            vmem_limit_bytes=48 * 1024 * 1024,
        ),
        cost_estimate=cost,
    )(x2, y2)

    # Single tiny cross-lane reduce over (num_blocks*8, 128) partials.
    # TODO(synk): if profiles show exposed per-step DMA for small tiles, sweep
    # pipeline_mode=pl.Buffered(3) on the two input BlockSpecs.
    return -jnp.sum(partials)


def asymmetric_loss_ref(x, y, *, gamma_neg=GAMMA_NEG, gamma_pos=GAMMA_POS,
                        clip=CLIP, eps=EPS):
    """Literal JAX translation of the PyTorch forward (two logs, per-elem pow)."""
    x = x.astype(jnp.float32)
    y = y.astype(jnp.float32)
    xs_pos = jax.nn.sigmoid(x)
    xs_neg = 1.0 - xs_pos
    if clip is not None and clip > 0:
        xs_neg = jnp.minimum(xs_neg + clip, 1.0)
    los_pos = y * jnp.log(jnp.maximum(xs_pos, eps))
    los_neg = (1.0 - y) * jnp.log(jnp.maximum(xs_neg, eps))
    loss = los_pos + los_neg
    if gamma_neg > 0 or gamma_pos > 0:
        pt = xs_pos * y + xs_neg * (1.0 - y)
        gamma = gamma_pos * y + gamma_neg * (1.0 - y)
        loss = loss * jnp.power(1.0 - pt, gamma)
    return -jnp.sum(loss)


if __name__ == "__main__":
    key = jax.random.PRNGKey(0)
    k1, k2, k3, k4, k5, k6 = jax.random.split(key, 6)

    # 1) Multi-label classification: batch x num_labels, lane-aligned.
    B, C = 16, 128
    x = jax.random.normal(k1, (B, C), dtype=jnp.float32) * 2.0
    y = (jax.random.uniform(k2, (B, C)) > 0.7).astype(jnp.float32)
    out = jax.block_until_ready(asymmetric_loss(x, y))
    ref = jax.block_until_ready(asymmetric_loss_ref(x, y))
    assert jnp.allclose(out, ref, rtol=2e-5, atol=1e-3), (out, ref)

    # 2) Ragged label count (C % 128 != 0) + compressed int8 targets
    #    (HBM-bandwidth saver; kernel upcasts in-register).
    B2, C2 = 10, 48
    x2 = jax.random.normal(k3, (B2, C2), dtype=jnp.float32) * 2.0
    y2f = (jax.random.uniform(k4, (B2, C2)) > 0.7).astype(jnp.float32)
    out2 = jax.block_until_ready(asymmetric_loss(x2, y2f.astype(jnp.int8)))
    ref2 = jax.block_until_ready(asymmetric_loss_ref(x2, y2f))
    assert jnp.allclose(out2, ref2, rtol=2e-5, atol=1e-3), (out2, ref2)

    # 3) Multi-block "parallel" grid with a masked tail block (forced small tile).
    B3, C3 = 72, 128
    x3 = jax.random.normal(k5, (B3, C3), dtype=jnp.float32) * 2.0
    y3 = (jax.random.uniform(k6, (B3, C3)) > 0.7).astype(jnp.float32)
    out3 = jax.block_until_ready(asymmetric_loss(x3, y3, tile_rows=32))
    ref3 = jax.block_until_ready(asymmetric_loss_ref(x3, y3))
    assert jnp.allclose(out3, ref3, rtol=2e-5, atol=1e-3), (out3, ref3)

    print("KERNEL_OK")
</pallas_src>

<mosaic_0001>
module attributes {stable_mosaic.version = 11 : i64} {
  func.func @_asl_kernel(%arg0: i32, %arg1: memref<32x128xf32, #tpu.memory_space<vmem>>, %arg2: memref<32x128xf32, #tpu.memory_space<vmem>>, %arg3: memref<8x128xf32, #tpu.memory_space<vmem>>) attributes {dimension_semantics = [#tpu.dimension_semantics<parallel>], iteration_bounds = array<i64: 1>, scalar_prefetch = 0 : i64, scratch_operands = 0 : i64, tpu.core_type = #tpu.core_type<tc>, window_params = [{transform_indices = @transform_0, window_bounds = array<i64: 32, 128>}, {transform_indices = @transform_1, window_bounds = array<i64: 32, 128>}, {transform_indices = @transform_2, window_bounds = array<i64: 8, 128>}]} {
    %c0 = arith.constant 0 : index
    %c0_0 = arith.constant 0 : index
    %0 = vector.load %arg1[%c0, %c0_0] : memref<32x128xf32, #tpu.memory_space<vmem>>, vector<32x128xf32>
    %c0_1 = arith.constant 0 : index
    %c0_2 = arith.constant 0 : index
    %1 = vector.load %arg2[%c0_1, %c0_2] : memref<32x128xf32, #tpu.memory_space<vmem>>, vector<32x128xf32>
    %2 = arith.negf %0 : vector<32x128xf32>
    %3 = math.exp %2 : vector<32x128xf32>
    %cst = arith.constant 1.000000e+00 : f32
    %4 = vector.broadcast %cst : f32 to vector<32x128xf32>
    %5 = arith.addf %4, %3 : vector<32x128xf32>
    %6 = arith.divf %4, %5 : vector<32x128xf32>
    %cst_3 = arith.constant 1.000000e+00 : f32
    %7 = vector.broadcast %cst_3 : f32 to vector<32x128xf32>
    %8 = arith.subf %7, %6 : vector<32x128xf32>
    %cst_4 = arith.constant 5.000000e-02 : f32
    %9 = vector.broadcast %cst_4 : f32 to vector<32x128xf32>
    %10 = arith.addf %8, %9 : vector<32x128xf32>
    %cst_5 = arith.constant 1.000000e+00 : f32
    %11 = vector.broadcast %cst_5 : f32 to vector<32x128xf32>
    %12 = arith.minimumf %10, %11 : vector<32x128xf32>
    %13 = arith.mulf %6, %1 : vector<32x128xf32>
    %cst_6 = arith.constant 1.000000e+00 : f32
    %14 = vector.broadcast %cst_6 : f32 to vector<32x128xf32>
    %15 = arith.subf %14, %1 : vector<32x128xf32>
    %16 = arith.mulf %12, %15 : vector<32x128xf32>
    %17 = arith.addf %13, %16 : vector<32x128xf32>
    %cst_7 = arith.constant 9.99999993E-9 : f32
    %18 = vector.broadcast %cst_7 : f32 to vector<32x128xf32>
    %19 = arith.maximumf %17, %18 : vector<32x128xf32>
    %20 = math.log %19 : vector<32x128xf32>
    %cst_8 = arith.constant 1.000000e+00 : f32
    %21 = vector.broadcast %cst_8 : f32 to vector<32x128xf32>
    %22 = arith.subf %21, %17 : vector<32x128xf32>
    %cst_9 = arith.constant 0.000000e+00 : f32
    %23 = vector.broadcast %cst_9 : f32 to vector<32x128xf32>
    %24 = arith.cmpf ogt, %1, %23 : vector<32x128xf32>
    %cst_10 = arith.constant 1.000000e+00 : f32
    %25 = vector.broadcast %cst_10 : f32 to vector<32x128xf32>
    %26 = arith.select %24, %25, %22 : vector<32x128xi1>, vector<32x128xf32>
    %27 = arith.mulf %22, %26 : vector<32x128xf32>
    %28 = arith.mulf %20, %27 : vector<32x128xf32>
    %c0_i32 = arith.constant 0 : i32
    %29 = arith.cmpi eq, %arg0, %c0_i32 : i32
    %30 = arith.extui %29 : i1 to i32
    %c0_i32_11 = arith.constant 0 : i32
    %31 = arith.cmpi ne, %30, %c0_i32_11 : i32
    scf.if %31 {
      %35 = tpu.iota {dimensions = array<i32: 0>} : vector<32x128xi32>
      %c32_i32 = arith.constant 32 : i32
      %36 = arith.muli %arg0, %c32_i32 : i32
      %37 = vector.broadcast %36 : i32 to vector<32x128xi32>
      %38 = arith.addi %35, %37 : vector<32x128xi32>
      %c16_i32 = arith.constant 16 : i32
      %39 = vector.broadcast %c16_i32 : i32 to vector<32x128xi32>
      %40 = arith.cmpi slt, %38, %39 : vector<32x128xi32>
      %cst_14 = arith.constant 0.000000e+00 : f32
      %41 = vector.broadcast %cst_14 : f32 to vector<32x128xf32>
      %42 = arith.select %40, %28, %41 : vector<32x128xi1>, vector<32x128xf32>
      %43 = vector.shape_cast %42 : vector<32x128xf32> to vector<4x8x128xf32>
      %cst_15 = arith.constant dense<0.000000e+00> : vector<8x128xf32>
      %44 = vector.multi_reduction <add>, %43, %cst_15 [0] : vector<4x8x128xf32> to vector<8x128xf32>
      %c0_16 = arith.constant 0 : index
      %c0_17 = arith.constant 0 : index
      %45 = vector.load %arg3[%c0_16, %c0_17] : memref<8x128xf32, #tpu.memory_space<vmem>>, vector<8x128xf32>
      tpu.vector_store %arg3[%c0_16, %c0_17], %44 {strides = array<i32>} : memref<8x128xf32, #tpu.memory_space<vmem>>, vector<8x128xf32>,
    } else {
    }
    %c0_i32_12 = arith.constant 0 : i32
    %32 = arith.cmpi ne, %arg0, %c0_i32_12 : i32
    %33 = arith.extui %32 : i1 to i32
    %c0_i32_13 = arith.constant 0 : i32
    %34 = arith.cmpi ne, %33, %c0_i32_13 : i32
    scf.if %34 {
      %35 = vector.shape_cast %28 : vector<32x128xf32> to vector<4x8x128xf32>
      %cst_14 = arith.constant dense<0.000000e+00> : vector<8x128xf32>
      %36 = vector.multi_reduction <add>, %35, %cst_14 [0] : vector<4x8x128xf32> to vector<8x128xf32>
      %c0_15 = arith.constant 0 : index
      %c0_16 = arith.constant 0 : index
      %37 = vector.load %arg3[%c0_15, %c0_16] : memref<8x128xf32, #tpu.memory_space<vmem>>, vector<8x128xf32>
      tpu.vector_store %arg3[%c0_15, %c0_16], %36 {strides = array<i32>} : memref<8x128xf32, #tpu.memory_space<vmem>>, vector<8x128xf32>,
    } else {
    }
    return
  }
  func.func @transform_0(%arg0: i32) -> (i32, i32) {
    %c0_i32 = arith.constant 0 : i32
    %c0_i32_0 = arith.constant 0 : i32
    return %arg0, %c0_i32 : i32, i32
  }
  func.func @transform_1(%arg0: i32) -> (i32, i32) {
    %c0_i32 = arith.constant 0 : i32
    %c0_i32_0 = arith.constant 0 : i32
    return %arg0, %c0_i32 : i32, i32
  }
  func.func @transform_2(%arg0: i32) -> (i32, i32) {
    %c0_i32 = arith.constant 0 : i32
    %c0_i32_0 = arith.constant 0 : i32
    return %arg0, %c0_i32 : i32, i32
  }
}

</mosaic_0001>

<llo_original>
// kernel: tpu_custom_call.1
$region0: #{tpu_custom_call.1}
  #allocation0 [shape = 'u32[]', space=smem, size = 0x4, offset = 0x4, fixed_abs, tag = 'smem constant byte address 0x4 - core index']
  #allocation1 [shape = 'u32[144,128]{1,0:T(1,128)}', space=vmem, size = 0x12000, scoped, tag = 'internal scratch']
  %s0 = inlined_call_operand.hbm [shape: f32[16,128], index: 0, kind: input, shape index: {}]
  %s1 = inlined_call_operand.hbm [shape: f32[16,128], index: 1, kind: input, shape index: {}]
  %s2 = inlined_call_operand.hbm [shape: f32[8,128], index: 2, kind: output, shape index: {}]
  %s3 = sld [smem:[#allocation0]]
  $region34: #{tpu_custom_call.1} parent=0
    _
  %s5 = ssub.s32 1, %s3
  %s6 = scalar_select 0, %s5, %s3
  $region1: #{tpu_custom_call.1} parent=0
    #allocation2 [shape = 'u8[16384]{0}', space=vmem, size = 0x4000, scoped, tag = 'input window, operand 0, single buffered']
    #allocation3 [shape = 's32[1]{0}', space=sflag, size = 0x4, scoped, tag = 'scoped memory for tpu_custom_call.1']
    #allocation4 [shape = 's32[1]{0}', space=sflag, size = 0x4, scoped, tag = 'scoped memory for tpu_custom_call.1']
    #allocation5 [shape = 'u8[16384]{0}', space=vmem, size = 0x4000, scoped, tag = 'input window, operand 1, single buffered']
    #allocation6 [shape = 's32[1]{0}', space=sflag, size = 0x4, scoped, tag = 'scoped memory for tpu_custom_call.1']
    #allocation7 [shape = 'u8[4096]{0}', space=vmem, size = 0x1000, scoped, tag = 'output window, operand 0, single buffered']
    %7 = vsyncpa [#allocation3], 0
    %8 = vsyncpa [#allocation6], 0
    %9 = vsyncpa [#allocation4], 0
    // Predicated region
    $region2: #{tpu_custom_call.1} parent=1 // pred_check
      _
    $region3: #{tpu_custom_call.1} parent=1 // pred_check_branch
      %11 = sbr.rel (0) target = $region5
    $region4: #{tpu_custom_call.1} parent=1 // pred_region
      %s13 = ssub.s32 512, 256
      %14 = vsyncadd [#allocation3], %s13
      %s15 = sshll.u32 [#allocation2], 4
      %s16 = int_to_ptr.vmem [resolvable:$true] %s15
      %21 = dma.hbm_to_vmem [thread:$0]  %s0, 256, %s16, [#allocation3], 128, 128, 8
    $region5: #{tpu_custom_call.1} parent=1 // pred_fallthru
      _
    // Predicated region
    $region6: #{tpu_custom_call.1} parent=1 // pred_check
      _
    $region7: #{tpu_custom_call.1} parent=1 // pred_check_branch
      %23 = sbr.rel (0) target = $region9
    $region8: #{tpu_custom_call.1} parent=1 // pred_region
      %s25 = ssub.s32 512, 256
      %26 = vsyncadd [#allocation6], %s25
      %s27 = sshll.u32 [#allocation5], 4
      %s28 = int_to_ptr.vmem [resolvable:$true] %s27
      %33 = dma.hbm_to_vmem [thread:$0]  %s1, 256, %s28, [#allocation6], 128, 128, 8
    $region9: #{tpu_custom_call.1} parent=1 // pred_fallthru
      _
    // Predicated region
    $region10: #{tpu_custom_call.1} parent=1 // pred_check
      _
    $region11: #{tpu_custom_call.1} parent=1 // pred_check_branch
      %35 = sbr.rel (0) target = $region13
    $region12: #{tpu_custom_call.1} parent=1 // pred_region
      %36 = dma.done [#allocation3], 512
    $region13: #{tpu_custom_call.1} parent=1 // pred_fallthru
      _
    // Predicated region
    $region14: #{tpu_custom_call.1} parent=1 // pred_check
      _
    $region15: #{tpu_custom_call.1} parent=1 // pred_check_branch
      %38 = sbr.rel (0) target = $region17
    $region16: #{tpu_custom_call.1} parent=1 // pred_region
      %39 = dma.done [#allocation6], 512
    $region17: #{tpu_custom_call.1} parent=1 // pred_fallthru
      _
    %v40 = vld [vmem:[#allocation2] sm:$0xff]
    %v41 = vld [vmem:[#allocation2 + $0x8] sm:$0xff]
    %v42 = vld [vmem:[#allocation2 + $0x10] sm:$0xff]
    %v43 = vld [vmem:[#allocation2 + $0x18] sm:$0xff]
    %v44 = vld [vmem:[#allocation5] sm:$0xff]
    %v45 = vld [vmem:[#allocation5 + $0x8] sm:$0xff]
    %v46 = vld [vmem:[#allocation5 + $0x10] sm:$0xff]
    %v47 = vld [vmem:[#allocation5 + $0x18] sm:$0xff]
    %v48 = vxor.u32 %v40, 2147483648
    %v49 = vxor.u32 %v41, 2147483648
    %v50 = vxor.u32 %v42, 2147483648
    %v51 = vxor.u32 %v43, 2147483648
    %v52 = vmul.f32 %v48, 1.442695
    %v53 = vpow.pop %v52
    %v54 = vmul.f32 %v49, 1.442695
    %v55 = vpow.pop %v54
    %v56 = vmul.f32 %v50, 1.442695
    %v57 = vpow.pop %v56
    %v58 = vmul.f32 %v51, 1.442695
    %v59 = vpow.pop %v58
    %v60 = vadd.f32 %v53, 1.0
    %v61 = vadd.f32 %v55, 1.0
    %v62 = vadd.f32 %v57, 1.0
    %v63 = vadd.f32 %v59, 1.0
    %v64 = vrcp.pop %v60
    %v65 = vmul.f32 1.0, %v64
    %v66 = vrcp.pop %v61
    %v67 = vmul.f32 1.0, %v66
    %v68 = vrcp.pop %v62
    %v69 = vmul.f32 1.0, %v68
    %v70 = vrcp.pop %v63
    %v71 = vmul.f32 1.0, %v70
    %v72 = vsub.f32 1.0, %v65
    %v73 = vsub.f32 1.0, %v67
    %v74 = vsub.f32 1.0, %v69
    %v75 = vsub.f32 1.0, %v71
    %v76 = vadd.f32 %v72, 0.05
    %v77 = vadd.f32 %v73, 0.05
    %v78 = vadd.f32 %v74, 0.05
    %v79 = vadd.f32 %v75, 0.05
    %v80 = vmin.f32 %v76, 1.0
    %v81 = vmin.f32 %v77, 1.0
    %v82 = vmin.f32 %v78, 1.0
    %v83 = vmin.f32 %v79, 1.0
    %v84 = vmul.f32 %v65, %v44
    %v85 = vmul.f32 %v67, %v45
    %v86 = vmul.f32 %v69, %v46
    %v87 = vmul.f32 %v71, %v47
    %v88 = vsub.f32 1.0, %v44
    %v89 = vsub.f32 1.0, %v45
    %v90 = vsub.f32 1.0, %v46
    %v91 = vsub.f32 1.0, %v47
    %v92 = vmul.f32 %v80, %v88
    %v93 = vmul.f32 %v81, %v89
    %v94 = vmul.f32 %v82, %v90
    %v95 = vmul.f32 %v83, %v91
    %v96 = vadd.f32 %v84, %v92
    %v97 = vadd.f32 %v85, %v93
    %v98 = vadd.f32 %v86, %v94
    %v99 = vadd.f32 %v87, %v95
    %v100 = vmax.f32 %v96, 1e-08
    %v101 = vmax.f32 %v97, 1e-08
    %v102 = vmax.f32 %v98, 1e-08
    %v103 = vmax.f32 %v99, 1e-08
    %v104 = vlog2.pop %v100
    %v105 = vmul.f32 %v104, 0.6931472
    %v106 = vlog2.pop %v101
    %v107 = vmul.f32 %v106, 0.6931472
    %v108 = vlog2.pop %v102
    %v109 = vmul.f32 %v108, 0.6931472
    %v110 = vlog2.pop %v103
    %v111 = vmul.f32 %v110, 0.6931472
    %v112 = vsub.f32 1.0, %v96
    %v113 = vsub.f32 1.0, %v97
    %v114 = vsub.f32 1.0, %v98
    %v115 = vsub.f32 1.0, %v99
    %vm116 = vcmp.gt.f32.partialorder %v44, 0.0
    %vm117 = vcmp.gt.f32.partialorder %v45, 0.0
    %vm118 = vcmp.gt.f32.partialorder %v46, 0.0
    %vm119 = vcmp.gt.f32.partialorder %v47, 0.0
    %v120 = vsel %vm116, 1.0, %v112
    %v121 = vsel %vm117, 1.0, %v113
    %v122 = vsel %vm118, 1.0, %v114
    %v123 = vsel %vm119, 1.0, %v115
    %v124 = vmul.f32 %v112, %v120
    %v125 = vmul.f32 %v113, %v121
    %v126 = vmul.f32 %v114, %v122
    %v127 = vmul.f32 %v115, %v123
    %v128 = vmul.f32 %v105, %v124
    %v129 = vmul.f32 %v107, %v125
    %v130 = vmul.f32 %v109, %v126
    %v131 = vmul.f32 %v111, %v127
    %p132 = scmp.eq.s32.totalorder 0, 0
    // Predicated region
    $region18: #{tpu_custom_call.1} parent=1 // pred_check
      %p133 = pneg %p132
    $region19: #{tpu_custom_call.1} parent=1 // pred_check_branch
      %135 = sbr.rel (%p133) target = $region21
    $region20: #{tpu_custom_call.1} parent=1 // pred_region
      %v136 = vlaneseq
      %v137 = vshrl.u32 %v136, 7
      %v138 = vadd.s32 %v137, 8
      %v139 = vadd.s32 %v137, 16
      %v140 = vadd.s32 %v137, 24
      %s141 = smul.u32 0, 32
      %v142 = vstv %s141
      %v143 = vadd.s32 %v137, %v142
      %v144 = vadd.s32 %v138, %v142
      %v145 = vadd.s32 %v139, %v142
      %v146 = vadd.s32 %v140, %v142
      %vm147 = vcmp.lt.s32.totalorder %v143, 16
      %vm148 = vcmp.lt.s32.totalorder %v144, 16
      %vm149 = vcmp.lt.s32.totalorder %v145, 16
      %vm150 = vcmp.lt.s32.totalorder %v146, 16
      %v151 = vsel %vm147, %v128, 0.0
      %v152 = vsel %vm148, %v129, 0.0
      %v153 = vsel %vm149, %v130, 0.0
      %v154 = vsel %vm150, %v131, 0.0
      %v155 = vadd.f32 %v151, %v152
      %v156 = vadd.f32 %v155, %v153
      %v157 = vadd.f32 %v156, %v154
      %158 = vst [vmem:[#allocation7] sm:$0xff] %v157
    $region21: #{tpu_custom_call.1} parent=1 // pred_fallthru
      _
    %p159 = scmp.ne.s32.totalorder 0, 0
    // Predicated region
    $region22: #{tpu_custom_call.1} parent=1 // pred_check
      %p160 = pneg %p159
    $region23: #{tpu_custom_call.1} parent=1 // pred_check_branch
      %162 = sbr.rel (%p160) target = $region25
    $region24: #{tpu_custom_call.1} parent=1 // pred_region
      %v163 = vadd.f32 %v128, %v129
      %v164 = vadd.f32 %v163, %v130
      %v165 = vadd.f32 %v164, %v131
      %166 = vst [vmem:[#allocation7] sm:$0xff] %v165
    $region25: #{tpu_custom_call.1} parent=1 // pred_fallthru
      _
    // Predicated region
    $region26: #{tpu_custom_call.1} parent=1 // pred_check
      _
    $region27: #{tpu_custom_call.1} parent=1 // pred_check_branch
      %168 = sbr.rel (0) target = $region29
    $region28: #{tpu_custom_call.1} parent=1 // pred_region
      %s170 = ssub.s32 128, 128
      %171 = vsyncadd [#allocation4], %s170
      %s173 = sshll.u32 [#allocation7], 4
      %s174 = int_to_ptr.vmem [resolvable:$true] %s173
      %176 = dma.vmem_to_hbm [thread:$0]  %s174, 128, %s2, [#allocation4]
    $region29: #{tpu_custom_call.1} parent=1 // pred_fallthru
      _
    // Predicated region
    $region30: #{tpu_custom_call.1} parent=1 // pred_check
      _
    $region31: #{tpu_custom_call.1} parent=1 // pred_check_branch
      %178 = sbr.rel (0) target = $region33
    $region32: #{tpu_custom_call.1} parent=1 // pred_region
      %179 = dma.done [#allocation4], 128
    $region33: #{tpu_custom_call.1} parent=1 // pred_fallthru
      _
    %180 = vsyncpa [#allocation3], 1
    %181 = vsyncpa [#allocation6], 1
    %182 = vsyncpa [#allocation4], 1

</llo_original>
